<compile_context>
chip_gen: v5e
topology: v5e:2x2
jax: 0.10.0
libtpu: 0.0.40
codegen_flags: <defaults>
</compile_context>

<pallas_src>
import jax
import jax.numpy as jnp
from jax.experimental import pallas as pl
from jax.experimental.pallas import tpu as pltpu

_LANES = 128


def _vmem_capacity_bytes():
    try:
        return int(pltpu.get_tpu_info().vmem_capacity_bytes)
    except Exception:
        return 64 * 1024 * 1024  # conservative: v7x per-TC physical VMEM


def _make_kernel(gamma, delta, scale, eps, nch, rt, total_rows, n_inner, need_mask):
    # trace-time constants (fold -scale*delta and -scale*(1-delta))
    c_bg = -scale * (1.0 - delta)
    c_fg = -scale * delta

    def kernel(logs_ref, y_ref, o_ref):
        s = pl.program_id(2)

        # output block is resident across the inner spatial axis: init at s == 0
        @pl.when(s == 0)
        def _():
            o_ref[...] = jnp.zeros_like(o_ref)

        # ---- pass 1: per-position max over channels (elementwise VPU only) ----
        m = logs_ref[0].astype(jnp.float32)                 # (rt, 128)
        for c in range(1, nch):
            m = jnp.maximum(m, logs_ref[c].astype(jnp.float32))

        # ---- pass 2: softmax denominator + focal numerators, one channel at a
        # time; only a few (rt, 128) f32 accumulators stay live ----
        x0 = logs_ref[0].astype(jnp.float32) - m
        e0 = jnp.exp(x0)
        y0 = y_ref[0].astype(jnp.float32)
        s_bg = y0 * x0                                      # y0 * (x0 - m)
        sum_e = e0
        s_fg = jnp.zeros_like(m)
        y_fg = jnp.zeros_like(m)
        for c in range(1, nch):
            xc = logs_ref[c].astype(jnp.float32) - m
            sum_e = sum_e + jnp.exp(xc)
            yc = y_ref[c].astype(jnp.float32)
            s_fg = s_fg + yc * xc                           # direct fg accumulation
            y_fg = y_fg + yc

        log_sum = jnp.log(sum_e)
        t_bg = s_bg - y0 * log_sum        # y[:,0]   * log_pred[:,0]
        t_fg = s_fg - y_fg * log_sum      # sum_{c>0} y[:,c] * log_pred[:,c]

        if gamma == 0.0:
            bg = c_bg * t_bg              # pow(x, 0) == 1
        else:
            inv = pl.reciprocal(sum_e, approx=True)
            inv = inv * (2.0 - sum_e * inv)               # one Newton step (cheap)
            pred0 = jnp.clip(e0 * inv, eps, 1.0 - eps)
            base = 1.0 - pred0
            gi = int(gamma)
            if float(gi) == float(gamma) and 1 <= gi <= 4:
                w0 = base                                  # e.g. gamma==2 -> 1 mul
                for _ in range(gi - 1):
                    w0 = w0 * base
            else:
                # base is clipped to [eps, 1-eps] > 0, so pow == exp(g*log(base))
                w0 = jnp.exp(gamma * jnp.log(base))
            bg = (c_bg * w0) * t_bg

        per_elem = bg + c_fg * t_fg                         # (rt, 128)

        if need_mask:
            # partial last block / unused tile slot: zero the rows beyond the
            # valid extent (one select per spatial element, not per channel).
            o = pl.program_id(1)
            tile = o * n_inner + s
            valid = total_rows - tile * rt                  # may be <=0 or > rt
            row_id = jax.lax.broadcasted_iota(jnp.int32, (rt, _LANES), 0)
            per_elem = jnp.where(row_id < valid, per_elem, 0.0)

        # layout-preserving fold to a lane-dense (8,128) slab, accumulated
        # across the inner spatial axis (pure VPU adds, no XLU reduce)
        o_ref[...] += jnp.sum(per_elem.reshape(rt // 8, 8, _LANES), axis=0)

    return kernel


def modified_focal_loss(logs, yb_oh, mask=None, gamma=0.0, delta=0.5,
                        scale=2.0, eps=1e-5):
    # `mask` is accepted for API parity; the reference forward never uses it.
    del mask
    assert logs.shape == yb_oh.shape
    nb, nch = logs.shape[:2]
    spatial = 1
    for d in logs.shape[2:]:
        spatial *= d

    # Flatten spatial dims.  Zero-pad only to the next 128-lane boundary when
    # needed (free reshape in the common spatial % 128 == 0 case).  A floor of
    # 32 rows keeps every block within the array for tiny inputs.
    rows = -(-spatial // _LANES)
    rows_p = max(rows, 32)
    s_pad = rows_p * _LANES

    def prep(a):
        a = a.reshape(nb, nch, spatial)                     # keep native dtype
        if s_pad != spatial:
            a = jnp.pad(a, ((0, 0), (0, 0), (0, s_pad - spatial)))
        return a.reshape(nb, nch, rows_p, _LANES)

    logs_r = prep(logs)
    yb_r = prep(yb_oh)

    # ---- per-generation VMEM-aware tile sizing --------------------------------
    cap = _vmem_capacity_bytes()                            # 128 MiB v5e/v6e, 64 MiB v7x
    vmem_limit = min((cap * 3) // 4, 96 * 1024 * 1024)      # requested scoped limit
    in_bytes_per_row = nch * _LANES * (logs.dtype.itemsize + yb_oh.dtype.itemsize)
    acc_bytes_per_row = 10 * _LANES * 4                     # live f32 temps in kernel
    budget = (vmem_limit * 7) // 10                         # headroom for compiler temps
    rt = budget // (2 * in_bytes_per_row + acc_bytes_per_row)
    rt = max(32, min(int(rt), 4096))
    rt = (rt // 32) * 32                                    # native int8/bf16/f32 tiling
    rt = min(rt, (rows_p // 32) * 32)                       # never exceed the array

    n_tiles = -(-rows_p // rt)

    # Split spatial tiles over a second "parallel" axis when the batch axis
    # alone cannot feed both v7x TensorCores (nb odd / nb == 1).
    n_outer = 2 if (nb % 2 == 1 and n_tiles >= 2) else 1
    n_inner = -(-n_tiles // n_outer)

    need_mask = (rows_p % rt != 0) or (n_outer * n_inner != n_tiles)

    kernel = _make_kernel(float(gamma), float(delta), float(scale), float(eps),
                          nch, rt, rows_p, n_inner, need_mask)

    def in_map(b, o, s):
        # clamp so an unused (o, s) slot re-reads the last tile (masked to 0)
        return (b, 0, jnp.minimum(o * n_inner + s, n_tiles - 1), 0)

    in_spec = pl.BlockSpec((None, nch, rt, _LANES), in_map)

    cost = pl.CostEstimate(
        flops=nb * rows_p * _LANES * nch * 8,
        transcendentals=nb * rows_p * _LANES * (nch + 1),
        bytes_accessed=int(logs_r.size) * logs_r.dtype.itemsize
        + int(yb_r.size) * yb_r.dtype.itemsize
        + nb * n_outer * 8 * _LANES * 4,
    )

    part = pl.pallas_call(
        kernel,
        out_shape=jax.ShapeDtypeStruct((nb, n_outer, 8, _LANES), jnp.float32),
        grid_spec=pltpu.PrefetchScalarGridSpec(
            num_scalar_prefetch=0,
            grid=(nb, n_outer, n_inner),
            in_specs=[in_spec, in_spec],
            out_specs=pl.BlockSpec((None, None, 8, _LANES),
                                   lambda b, o, s: (b, o, 0, 0)),
        ),
        compiler_params=pltpu.CompilerParams(
            dimension_semantics=("parallel", "parallel", "arbitrary"),
            vmem_limit_bytes=int(vmem_limit)),
        cost_estimate=cost,
    )(logs_r, yb_r)

    # tiny scalar epilogue: mean over (batch, original spatial)
    return jnp.sum(part) / float(nb * spatial)


def _reference(logs, yb_oh, gamma=0.0, delta=0.5, scale=2.0, eps=1e-5):
    # pure-JAX mirror of the PyTorch module
    pred = jnp.clip(jax.nn.softmax(logs, axis=1), eps, 1.0 - eps)
    log_pred = jax.nn.log_softmax(logs, axis=1)
    weight_bg = jnp.power(1.0 - pred[:, :1], gamma) * (1.0 - delta)
    focal_bg = -scale * weight_bg * yb_oh[:, :1] * log_pred[:, :1]
    focal_fg = -scale * delta * yb_oh[:, 1:] * log_pred[:, 1:]
    focal = jnp.concatenate([focal_bg, focal_fg], axis=1)
    return jnp.mean(jnp.sum(focal, axis=1))


if __name__ == "__main__":
    key = jax.random.PRNGKey(0)
    k1, k2, k3, k4 = jax.random.split(key, 4)

    # --- test 1/2: nb=2, nch=4, 16x16, low-precision one-hot target -----------
    nb, nch, H, W = 2, 4, 16, 16
    logs = jax.random.normal(k1, (nb, nch, H, W), dtype=jnp.float32)
    labels = jax.random.randint(k2, (nb, H, W), 0, nch)
    yb_oh = jax.nn.one_hot(labels, nch, axis=1, dtype=jnp.int8)   # kernel up-casts
    yb_f32 = yb_oh.astype(jnp.float32)

    loss = jax.block_until_ready(modified_focal_loss(logs, yb_oh))
    ref = _reference(logs, yb_f32)
    assert abs(float(loss) - float(ref)) < 1e-4, (float(loss), float(ref))

    loss_g = jax.block_until_ready(
        modified_focal_loss(logs, yb_oh, gamma=2.0, delta=0.3, scale=1.5))
    ref_g = _reference(logs, yb_f32, gamma=2.0, delta=0.3, scale=1.5)
    assert abs(float(loss_g) - float(ref_g)) < 1e-4, (float(loss_g), float(ref_g))

    # --- test 3: odd batch + non-divisible tile count -> exercises the partial
    # block row-mask, the spatial "parallel" split and the non-integer-gamma path
    nb3, nch3, H3, W3 = 1, 3, 40, 128
    logs3 = jax.random.normal(k3, (nb3, nch3, H3, W3), dtype=jnp.float32)
    labels3 = jax.random.randint(k4, (nb3, H3, W3), 0, nch3)
    yb3 = jax.nn.one_hot(labels3, nch3, axis=1, dtype=jnp.int8)

    loss3 = jax.block_until_ready(
        modified_focal_loss(logs3, yb3, gamma=0.5, delta=0.7, scale=1.0))
    ref3 = _reference(logs3, yb3.astype(jnp.float32), gamma=0.5, delta=0.7, scale=1.0)
    assert abs(float(loss3) - float(ref3)) < 1e-4, (float(loss3), float(ref3))

    print("KERNEL_OK")
</pallas_src>

<mosaic_0001>
module attributes {stable_mosaic.version = 11 : i64} {
  func.func @kernel(%arg0: i32, %arg1: i32, %arg2: i32, %arg3: memref<1x4x32x128xf32, #tpu.memory_space<vmem>>, %arg4: memref<1x4x32x128xi8, #tpu.memory_space<vmem>>, %arg5: memref<1x1x8x128xf32, #tpu.memory_space<vmem>>) attributes {dimension_semantics = [#tpu.dimension_semantics<parallel>, #tpu.dimension_semantics<parallel>, #tpu.dimension_semantics<arbitrary>], iteration_bounds = array<i64: 2, 1, 1>, scalar_prefetch = 0 : i64, scratch_operands = 0 : i64, tpu.core_type = #tpu.core_type<tc>, window_params = [{transform_indices = @transform_0, window_bounds = array<i64: 1, 4, 32, 128>}, {transform_indices = @transform_1, window_bounds = array<i64: 1, 4, 32, 128>}, {transform_indices = @transform_2, window_bounds = array<i64: 1, 1, 8, 128>}]} {
    %c0_i32 = arith.constant 0 : i32
    %0 = arith.cmpi eq, %arg2, %c0_i32 : i32
    %1 = arith.extui %0 : i1 to i32
    %c0_i32_0 = arith.constant 0 : i32
    %2 = arith.cmpi ne, %1, %c0_i32_0 : i32
    scf.if %2 {
      %cst_57 = arith.constant 0.000000e+00 : f32
      %75 = vector.broadcast %cst_57 : f32 to vector<8x128xf32>
      %c0_58 = arith.constant 0 : index
      %c0_59 = arith.constant 0 : index
      %c0_60 = arith.constant 0 : index
      %c0_61 = arith.constant 0 : index
      %76 = vector.load %arg5[%c0_58, %c0_59, %c0_60, %c0_61] : memref<1x1x8x128xf32, #tpu.memory_space<vmem>>, vector<1x1x8x128xf32>
      %77 = vector.shape_cast %76 : vector<1x1x8x128xf32> to vector<8x128xf32>
      %78 = vector.shape_cast %75 : vector<8x128xf32> to vector<1x1x8x128xf32>
      tpu.vector_store %arg5[%c0_58, %c0_59, %c0_60, %c0_61], %78 {strides = array<i32>} : memref<1x1x8x128xf32, #tpu.memory_space<vmem>>, vector<1x1x8x128xf32>,
    } else {
    }
    %c0 = arith.constant 0 : index
    %c0_1 = arith.constant 0 : index
    %c0_2 = arith.constant 0 : index
    %c0_3 = arith.constant 0 : index
    %3 = vector.load %arg3[%c0, %c0_1, %c0_2, %c0_3] : memref<1x4x32x128xf32, #tpu.memory_space<vmem>>, vector<1x1x32x128xf32>
    %4 = vector.shape_cast %3 : vector<1x1x32x128xf32> to vector<32x128xf32>
    %c0_4 = arith.constant 0 : index
    %c1 = arith.constant 1 : index
    %c0_5 = arith.constant 0 : index
    %c0_6 = arith.constant 0 : index
    %5 = vector.load %arg3[%c0_4, %c1, %c0_5, %c0_6] : memref<1x4x32x128xf32, #tpu.memory_space<vmem>>, vector<1x1x32x128xf32>
    %6 = vector.shape_cast %5 : vector<1x1x32x128xf32> to vector<32x128xf32>
    %7 = arith.maximumf %4, %6 : vector<32x128xf32>
    %c0_7 = arith.constant 0 : index
    %c2 = arith.constant 2 : index
    %c0_8 = arith.constant 0 : index
    %c0_9 = arith.constant 0 : index
    %8 = vector.load %arg3[%c0_7, %c2, %c0_8, %c0_9] : memref<1x4x32x128xf32, #tpu.memory_space<vmem>>, vector<1x1x32x128xf32>
    %9 = vector.shape_cast %8 : vector<1x1x32x128xf32> to vector<32x128xf32>
    %10 = arith.maximumf %7, %9 : vector<32x128xf32>
    %c0_10 = arith.constant 0 : index
    %c3 = arith.constant 3 : index
    %c0_11 = arith.constant 0 : index
    %c0_12 = arith.constant 0 : index
    %11 = vector.load %arg3[%c0_10, %c3, %c0_11, %c0_12] : memref<1x4x32x128xf32, #tpu.memory_space<vmem>>, vector<1x1x32x128xf32>
    %12 = vector.shape_cast %11 : vector<1x1x32x128xf32> to vector<32x128xf32>
    %13 = arith.maximumf %10, %12 : vector<32x128xf32>
    %c0_13 = arith.constant 0 : index
    %c0_14 = arith.constant 0 : index
    %c0_15 = arith.constant 0 : index
    %c0_16 = arith.constant 0 : index
    %14 = vector.load %arg3[%c0_13, %c0_14, %c0_15, %c0_16] : memref<1x4x32x128xf32, #tpu.memory_space<vmem>>, vector<1x1x32x128xf32>
    %15 = vector.shape_cast %14 : vector<1x1x32x128xf32> to vector<32x128xf32>
    %16 = arith.subf %15, %13 : vector<32x128xf32>
    %17 = math.exp %16 : vector<32x128xf32>
    %c0_17 = arith.constant 0 : index
    %c0_18 = arith.constant 0 : index
    %c0_19 = arith.constant 0 : index
    %c0_20 = arith.constant 0 : index
    %18 = vector.load %arg4[%c0_17, %c0_18, %c0_19, %c0_20] : memref<1x4x32x128xi8, #tpu.memory_space<vmem>>, vector<1x1x32x128xi8>
    %19 = vector.shape_cast %18 : vector<1x1x32x128xi8> to vector<32x128xi8>
    %20 = arith.sitofp %19 : vector<32x128xi8> to vector<32x128xf32>
    %21 = arith.mulf %20, %16 : vector<32x128xf32>
    %cst = arith.constant 0.000000e+00 : f32
    %22 = vector.broadcast %cst : f32 to vector<32x128xf32>
    %cst_21 = arith.constant 0.000000e+00 : f32
    %23 = vector.broadcast %cst_21 : f32 to vector<32x128xf32>
    %c0_22 = arith.constant 0 : index
    %c1_23 = arith.constant 1 : index
    %c0_24 = arith.constant 0 : index
    %c0_25 = arith.constant 0 : index
    %24 = vector.load %arg3[%c0_22, %c1_23, %c0_24, %c0_25] : memref<1x4x32x128xf32, #tpu.memory_space<vmem>>, vector<1x1x32x128xf32>
    %25 = vector.shape_cast %24 : vector<1x1x32x128xf32> to vector<32x128xf32>
    %26 = arith.subf %25, %13 : vector<32x128xf32>
    %27 = math.exp %26 : vector<32x128xf32>
    %28 = arith.addf %17, %27 : vector<32x128xf32>
    %c0_26 = arith.constant 0 : index
    %c1_27 = arith.constant 1 : index
    %c0_28 = arith.constant 0 : index
    %c0_29 = arith.constant 0 : index
    %29 = vector.load %arg4[%c0_26, %c1_27, %c0_28, %c0_29] : memref<1x4x32x128xi8, #tpu.memory_space<vmem>>, vector<1x1x32x128xi8>
    %30 = vector.shape_cast %29 : vector<1x1x32x128xi8> to vector<32x128xi8>
    %31 = arith.sitofp %30 : vector<32x128xi8> to vector<32x128xf32>
    %32 = arith.mulf %31, %26 : vector<32x128xf32>
    %33 = arith.addf %22, %32 : vector<32x128xf32>
    %34 = arith.addf %23, %31 : vector<32x128xf32>
    %c0_30 = arith.constant 0 : index
    %c2_31 = arith.constant 2 : index
    %c0_32 = arith.constant 0 : index
    %c0_33 = arith.constant 0 : index
    %35 = vector.load %arg3[%c0_30, %c2_31, %c0_32, %c0_33] : memref<1x4x32x128xf32, #tpu.memory_space<vmem>>, vector<1x1x32x128xf32>
    %36 = vector.shape_cast %35 : vector<1x1x32x128xf32> to vector<32x128xf32>
    %37 = arith.subf %36, %13 : vector<32x128xf32>
    %38 = math.exp %37 : vector<32x128xf32>
    %39 = arith.addf %28, %38 : vector<32x128xf32>
    %c0_34 = arith.constant 0 : index
    %c2_35 = arith.constant 2 : index
    %c0_36 = arith.constant 0 : index
    %c0_37 = arith.constant 0 : index
    %40 = vector.load %arg4[%c0_34, %c2_35, %c0_36, %c0_37] : memref<1x4x32x128xi8, #tpu.memory_space<vmem>>, vector<1x1x32x128xi8>
    %41 = vector.shape_cast %40 : vector<1x1x32x128xi8> to vector<32x128xi8>
    %42 = arith.sitofp %41 : vector<32x128xi8> to vector<32x128xf32>
    %43 = arith.mulf %42, %37 : vector<32x128xf32>
    %44 = arith.addf %33, %43 : vector<32x128xf32>
    %45 = arith.addf %34, %42 : vector<32x128xf32>
    %c0_38 = arith.constant 0 : index
    %c3_39 = arith.constant 3 : index
    %c0_40 = arith.constant 0 : index
    %c0_41 = arith.constant 0 : index
    %46 = vector.load %arg3[%c0_38, %c3_39, %c0_40, %c0_41] : memref<1x4x32x128xf32, #tpu.memory_space<vmem>>, vector<1x1x32x128xf32>
    %47 = vector.shape_cast %46 : vector<1x1x32x128xf32> to vector<32x128xf32>
    %48 = arith.subf %47, %13 : vector<32x128xf32>
    %49 = math.exp %48 : vector<32x128xf32>
    %50 = arith.addf %39, %49 : vector<32x128xf32>
    %c0_42 = arith.constant 0 : index
    %c3_43 = arith.constant 3 : index
    %c0_44 = arith.constant 0 : index
    %c0_45 = arith.constant 0 : index
    %51 = vector.load %arg4[%c0_42, %c3_43, %c0_44, %c0_45] : memref<1x4x32x128xi8, #tpu.memory_space<vmem>>, vector<1x1x32x128xi8>
    %52 = vector.shape_cast %51 : vector<1x1x32x128xi8> to vector<32x128xi8>
    %53 = arith.sitofp %52 : vector<32x128xi8> to vector<32x128xf32>
    %54 = arith.mulf %53, %48 : vector<32x128xf32>
    %55 = arith.addf %44, %54 : vector<32x128xf32>
    %56 = arith.addf %45, %53 : vector<32x128xf32>
    %57 = math.log %50 : vector<32x128xf32>
    %58 = arith.mulf %20, %57 : vector<32x128xf32>
    %59 = arith.subf %21, %58 : vector<32x128xf32>
    %60 = arith.mulf %56, %57 : vector<32x128xf32>
    %61 = arith.subf %55, %60 : vector<32x128xf32>
    %cst_46 = arith.constant -1.000000e+00 : f32
    %62 = vector.broadcast %cst_46 : f32 to vector<32x128xf32>
    %63 = arith.mulf %62, %59 : vector<32x128xf32>
    %cst_47 = arith.constant -1.000000e+00 : f32
    %64 = vector.broadcast %cst_47 : f32 to vector<32x128xf32>
    %65 = arith.mulf %64, %61 : vector<32x128xf32>
    %66 = arith.addf %63, %65 : vector<32x128xf32>
    %c0_48 = arith.constant 0 : index
    %c0_49 = arith.constant 0 : index
    %c0_50 = arith.constant 0 : index
    %c0_51 = arith.constant 0 : index
    %67 = vector.load %arg5[%c0_48, %c0_49, %c0_50, %c0_51] : memref<1x1x8x128xf32, #tpu.memory_space<vmem>>, vector<1x1x8x128xf32>
    %68 = vector.shape_cast %67 : vector<1x1x8x128xf32> to vector<8x128xf32>
    %69 = vector.shape_cast %66 : vector<32x128xf32> to vector<4x8x128xf32>
    %cst_52 = arith.constant dense<0.000000e+00> : vector<8x128xf32>
    %70 = vector.multi_reduction <add>, %69, %cst_52 [0] : vector<4x8x128xf32> to vector<8x128xf32>
    %71 = arith.addf %68, %70 : vector<8x128xf32>
    %c0_53 = arith.constant 0 : index
    %c0_54 = arith.constant 0 : index
    %c0_55 = arith.constant 0 : index
    %c0_56 = arith.constant 0 : index
    %72 = vector.load %arg5[%c0_53, %c0_54, %c0_55, %c0_56] : memref<1x1x8x128xf32, #tpu.memory_space<vmem>>, vector<1x1x8x128xf32>
    %73 = vector.shape_cast %72 : vector<1x1x8x128xf32> to vector<8x128xf32>
    %74 = vector.shape_cast %71 : vector<8x128xf32> to vector<1x1x8x128xf32>
    tpu.vector_store %arg5[%c0_53, %c0_54, %c0_55, %c0_56], %74 {strides = array<i32>} : memref<1x1x8x128xf32, #tpu.memory_space<vmem>>, vector<1x1x8x128xf32>,
    return
  }
  func.func @transform_0(%arg0: i32, %arg1: i32, %arg2: i32) -> (i32, i32, i32, i32) {
    %c1_i32 = arith.constant 1 : i32
    %0 = arith.muli %arg1, %c1_i32 : i32
    %1 = arith.addi %0, %arg2 : i32
    %c0_i32 = arith.constant 0 : i32
    %2 = arith.minsi %1, %c0_i32 : i32
    %c0_i32_0 = arith.constant 0 : i32
    %c0_i32_1 = arith.constant 0 : i32
    %c0_i32_2 = arith.constant 0 : i32
    return %arg0, %c0_i32_0, %2, %c0_i32_1 : i32, i32, i32, i32
  }
  func.func @transform_1(%arg0: i32, %arg1: i32, %arg2: i32) -> (i32, i32, i32, i32) {
    %c1_i32 = arith.constant 1 : i32
    %0 = arith.muli %arg1, %c1_i32 : i32
    %1 = arith.addi %0, %arg2 : i32
    %c0_i32 = arith.constant 0 : i32
    %2 = arith.minsi %1, %c0_i32 : i32
    %c0_i32_0 = arith.constant 0 : i32
    %c0_i32_1 = arith.constant 0 : i32
    %c0_i32_2 = arith.constant 0 : i32
    return %arg0, %c0_i32_0, %2, %c0_i32_1 : i32, i32, i32, i32
  }
  func.func @transform_2(%arg0: i32, %arg1: i32, %arg2: i32) -> (i32, i32, i32, i32) {
    %c0_i32 = arith.constant 0 : i32
    %c0_i32_0 = arith.constant 0 : i32
    %c0_i32_1 = arith.constant 0 : i32
    return %arg0, %arg1, %c0_i32, %c0_i32_0 : i32, i32, i32, i32
  }
}

</mosaic_0001>

<llo_original>
// kernel: tpu_custom_call.1
$region0: #{tpu_custom_call.1}
  #allocation0 [shape = 'u32[]', space=smem, size = 0x4, offset = 0x4, fixed_abs, tag = 'smem constant byte address 0x4 - core index']
  #allocation1 [shape = 'u32[72,128]{1,0:T(1,128)}', space=vmem, size = 0x9000, scoped, tag = 'internal scratch']
  %s0 = inlined_call_operand.hbm [shape: f32[2,4,32,128], index: 0, kind: input, shape index: {}]
  %s1 = inlined_call_operand.hbm [shape: s8[2,4,32,128], index: 1, kind: input, shape index: {}]
  %s2 = inlined_call_operand.hbm [shape: f32[2,1,8,128], index: 2, kind: output, shape index: {}]
  %s3 = sld [smem:[#allocation0]]
  $region53: #{tpu_custom_call.1} parent=0
    _
  %s5 = ssub.s32 1, %s3
  %s6 = scalar_select 0, %s5, %s3
  $region1: #{tpu_custom_call.1} parent=0
    #allocation2 [shape = 'u8[131072]{0}', space=vmem, size = 0x20000, scoped, tag = 'input window, operand 0']
    #allocation3 [shape = 's32[2]{0}', space=sflag, size = 0x8, scoped, tag = 'scoped memory for tpu_custom_call.1']
    #allocation4 [shape = 's32[2]{0}', space=sflag, size = 0x8, scoped, tag = 'scoped memory for tpu_custom_call.1']
    #allocation5 [shape = 'u8[32768]{0}', space=vmem, size = 0x8000, scoped, tag = 'input window, operand 1']
    #allocation6 [shape = 's32[2]{0}', space=sflag, size = 0x8, scoped, tag = 'scoped memory for tpu_custom_call.1']
    #allocation7 [shape = 'u8[8192]{0}', space=vmem, size = 0x2000, scoped, tag = 'output window, operand 0']
    %7 = vsyncpa [#allocation3], 0
    %s8 = scalar_lea.sflag [#allocation3], 1
    %9 = vsyncpa %s8, 0
    %10 = vsyncpa [#allocation6], 0
    %s11 = scalar_lea.sflag [#allocation6], 1
    %12 = vsyncpa %s11, 0
    %13 = vsyncpa [#allocation4], 0
    %s14 = scalar_lea.sflag [#allocation4], 1
    %15 = vsyncpa %s14, 0
    loop: start=0, step=1, limit=4
    $region2: #{tpu_custom_call.1} parent=1 // loop_pre_header
      _
    $region3: #{tpu_custom_call.1} parent=1 // loop_header
      %s17 = sphi 0, %s21
      %p18 = scmp.ge.s32.totalorder %s17, 4
      %s24 = sphi 0, %s43
      %s25 = sphi 0, %s39
      %s26 = sphi 0, %s35
      %s27 = sphi 0, %s24
      %s28 = sphi 0, %s25
      %s29 = sphi 0, %s26
      %s30 = sphi 0, %s27
      %s31 = sphi 0, %s28
      %s32 = sphi 0, %s29
      %s54 = sphi 0, %s56
      %s57 = sphi 0, %s54
      %s58 = sphi 0, %s57
      %s74 = sphi 0, %s58
      %s88 = sphi 0, %s90
      %s91 = sphi 0, %s88
      %s92 = sphi 0, %s91
      %s108 = sphi 0, %s92
      %s116 = sphi 0, %s118
      %s119 = sphi 0, %s116
      %s120 = sphi 0, %s119
      %s136 = sphi 0, %s120
    $region4: #{tpu_custom_call.1} parent=1 // loop_header_branch
      %20 = sbr.rel (%p18) target = $region8
    $region5: #{tpu_custom_call.1} parent=1 // loop_body
      %s22 = ssub.s32 %s17, 1
      %s23 = ssub.s32 %s17, 2
      %s33 = sadd.s32 1, %s26
      %p34 = scmp.ge.s32.totalorder %s33, 1
      %s35 = scalar_select %p34, 0, %s33
      %s36 = sadd.s32 1, %s25
      %s37 = scalar_select %p34, %s36, %s25
      %p38 = scmp.ge.s32.totalorder %s37, 1
      %s39 = scalar_select %p38, 0, %s37
      %s40 = sadd.s32 1, %s24
      %s41 = scalar_select %p38, %s40, %s24
      %p42 = scmp.ge.s32.totalorder %s41, 2
      %s43 = scalar_select %p42, 0, %s41
      %s44 = sadd.s32 %s25, %s26
      %p45 = scmp.lt.s32.totalorder %s44, 0
      %s46 = scalar_select %p45, %s44, 0
      %s47 = sadd.s32 %s39, %s35
      %p48 = scmp.lt.s32.totalorder %s47, 0
      %s49 = scalar_select %p48, %s47, 0
      %s50 = ssub.s32 %s24, %s43
      %s51 = ssub.s32 %s46, %s49
      %s52 = sor.u32 %s50, %s51
      %p53 = scmp.eq.s32.totalorder %s52, 0
      %s55 = sadd.s32 %s54, 1
      %s56 = scalar_select %p53, %s54, %s55
      %p59 = pneg %p53
      %p60 = scmp.eq.s32.totalorder %s17, 1
      %p61 = por %p59, %p60
      %p62 = scmp.ne.s32.totalorder %s54, %s57
      %p63 = scmp.eq.s32.totalorder %s17, 0
      %p64 = por %p62, %p63
      %p65 = scmp.ne.s32.totalorder %s54, %s57
      %p66 = scmp.eq.s32.totalorder %s22, 1
      %p67 = por %p65, %p66
      %p68 = scmp.ne.s32.totalorder %s57, %s58
      %p69 = scmp.eq.s32.totalorder %s22, 0
      %p70 = por %p68, %p69
      %p71 = scmp.ne.s32.totalorder %s57, %s58
      %p72 = scmp.eq.s32.totalorder %s23, 1
      %p73 = por %p71, %p72
      %p75 = scmp.ne.s32.totalorder %s58, %s74
      %p76 = scmp.eq.s32.totalorder %s23, 0
      %p77 = por %p75, %p76
      %s78 = sadd.s32 %s25, %s26
      %p79 = scmp.lt.s32.totalorder %s78, 0
      %s80 = scalar_select %p79, %s78, 0
      %s81 = sadd.s32 %s39, %s35
      %p82 = scmp.lt.s32.totalorder %s81, 0
      %s83 = scalar_select %p82, %s81, 0
      %s84 = ssub.s32 %s24, %s43
      %s85 = ssub.s32 %s80, %s83
      %s86 = sor.u32 %s84, %s85
      %p87 = scmp.eq.s32.totalorder %s86, 0
      %s89 = sadd.s32 %s88, 1
      %s90 = scalar_select %p87, %s88, %s89
      %p93 = pneg %p87
      %p94 = scmp.eq.s32.totalorder %s17, 1
      %p95 = por %p93, %p94
      %p96 = scmp.ne.s32.totalorder %s88, %s91
      %p97 = scmp.eq.s32.totalorder %s17, 0
      %p98 = por %p96, %p97
      %p99 = scmp.ne.s32.totalorder %s88, %s91
      %p100 = scmp.eq.s32.totalorder %s22, 1
      %p101 = por %p99, %p100
      %p102 = scmp.ne.s32.totalorder %s91, %s92
      %p103 = scmp.eq.s32.totalorder %s22, 0
      %p104 = por %p102, %p103
      %p105 = scmp.ne.s32.totalorder %s91, %s92
      %p106 = scmp.eq.s32.totalorder %s23, 1
      %p107 = por %p105, %p106
      %p109 = scmp.ne.s32.totalorder %s92, %s108
      %p110 = scmp.eq.s32.totalorder %s23, 0
      %p111 = por %p109, %p110
      %s112 = ssub.s32 %s24, %s43
      %s113 = ssub.s32 %s25, %s39
      %s114 = sor.u32 %s112, %s113
      %p115 = scmp.eq.s32.totalorder %s114, 0
      %s117 = sadd.s32 %s116, 1
      %s118 = scalar_select %p115, %s116, %s117
      %p121 = pneg %p115
      %p122 = scmp.eq.s32.totalorder %s17, 1
      %p123 = por %p121, %p122
      %p124 = scmp.ne.s32.totalorder %s116, %s119
      %p125 = scmp.eq.s32.totalorder %s17, 0
      %p126 = por %p124, %p125
      %p127 = scmp.ne.s32.totalorder %s116, %s119
      %p128 = scmp.eq.s32.totalorder %s22, 1
      %p129 = por %p127, %p128
      %p130 = scmp.ne.s32.totalorder %s119, %s120
      %p131 = scmp.eq.s32.totalorder %s22, 0
      %p132 = por %p130, %p131
      %p133 = scmp.ne.s32.totalorder %s119, %s120
      %p134 = scmp.eq.s32.totalorder %s23, 1
      %p135 = por %p133, %p134
      %p137 = scmp.ne.s32.totalorder %s120, %s136
      %p138 = scmp.eq.s32.totalorder %s23, 0
      %p139 = por %p137, %p138
      %p140 = scmp.le.s32.totalorder 1, %s17
      %p141 = scmp.lt.s32.totalorder %s17, 3
      %p142 = pnand %p140, %p141
      %p143 = pneg %p142
      // Predicated region
      $region9: #{tpu_custom_call.1} parent=5 // pred_check
        _
      $region10: #{tpu_custom_call.1} parent=5 // pred_check_branch
        %145 = sbr.rel (%p142) target = $region12
      $region11: #{tpu_custom_call.1} parent=5 // pred_region
        %s146 = ssub.s32 %s17, 1
      $region12: #{tpu_custom_call.1} parent=5 // pred_fallthru
        _
      %p147 = scmp.lt.s32.totalorder %s17, 2
      // Predicated region
      $region13: #{tpu_custom_call.1} parent=5 // pred_check
        %p148 = pneg %p147
      $region14: #{tpu_custom_call.1} parent=5 // pred_check_branch
        %150 = sbr.rel (%p148) target = $region16
      $region15: #{tpu_custom_call.1} parent=5 // pred_region
        // Predicated region
        $region17: #{tpu_custom_call.1} parent=15 // pred_check
          %p151 = pneg %p64
        $region18: #{tpu_custom_call.1} parent=15 // pred_check_branch
          %153 = sbr.rel (%p151) target = $region20
        $region19: #{tpu_custom_call.1} parent=15 // pred_region
          %s154 = sand.u32 %s54, 1
          %s155 = scalar_lea.sflag [#allocation3], %s154
          %s156 = sand.u32 %s54, 1
          %s157 = smul.addr %s156, 128
          %s158 = scalar_lea.vmem [#allocation2], %s157
          %s159 = sadd.s32 %s25, %s26
          %p160 = scmp.lt.s32.totalorder %s159, 0
          %s161 = scalar_select %p160, %s159, 0
          %s162 = smul.u32 4, %s161
          %164 = vsyncadd %s155, 0
          %s165 = smul.addr %s24, 16
          %s166 = sadd.s32 %s162, %s165
          %s167 = smul.addr %s166, 8
          %s168 = scalar_lea.hbm %s0, %s167
          %s169 = sshll.u32 %s168, 4
          %s170 = int_to_ptr.hbm [resolvable:$true] %s169
          %s171 = sshll.u32 %s158, 4
          %s172 = int_to_ptr.vmem [resolvable:$true] %s171
          %177 = dma.hbm_to_vmem [thread:$0]  %s170, 2048, %s172, %s155, 128, 128, 8
        $region20: #{tpu_custom_call.1} parent=15 // pred_fallthru
          _
        // Predicated region
        $region21: #{tpu_custom_call.1} parent=15 // pred_check
          %p178 = pneg %p98
        $region22: #{tpu_custom_call.1} parent=15 // pred_check_branch
          %180 = sbr.rel (%p178) target = $region24
        $region23: #{tpu_custom_call.1} parent=15 // pred_region
          %s181 = sand.u32 %s88, 1
          %s182 = scalar_lea.sflag [#allocation6], %s181
          %s183 = sand.u32 %s88, 1
          %s184 = smul.addr %s183, 32
          %s185 = scalar_lea.vmem [#allocation5], %s184
          %s186 = sadd.s32 %s25, %s26
          %p187 = scmp.lt.s32.totalorder %s186, 0
          %s188 = scalar_select %p187, %s186, 0
          %190 = vsyncadd %s182, 0
          %s191 = smul.addr %s24, 4
          %s192 = sadd.s32 %s188, %s191
          %s193 = smul.addr %s192, 8
          %s194 = scalar_lea.hbm %s1, %s193
          %s195 = sshll.u32 %s194, 4
          %s196 = int_to_ptr.hbm [resolvable:$true] %s195
          %s197 = sshll.u32 %s185, 4
          %s198 = int_to_ptr.vmem [resolvable:$true] %s197
          %203 = dma.hbm_to_vmem [thread:$0]  %s196, 512, %s198, %s182, 128, 128, 8
        $region24: #{tpu_custom_call.1} parent=15 // pred_fallthru
          _
      $region16: #{tpu_custom_call.1} parent=5 // pred_fallthru
        _
      %p204 = scmp.le.s32.totalorder 1, %s17
      %p205 = scmp.lt.s32.totalorder %s17, 3
      %p206 = pnand %p204, %p205
      %p207 = pneg %p206
      // Predicated region
      $region25: #{tpu_custom_call.1} parent=5 // pred_check
        _
      $region26: #{tpu_custom_call.1} parent=5 // pred_check_branch
        %209 = sbr.rel (%p206) target = $region28
      $region27: #{tpu_custom_call.1} parent=5 // pred_region
        %s210 = ssub.s32 %s17, 1
        %s211 = sand.u32 %s57, 1
        %s212 = scalar_lea.sflag [#allocation3], %s211
        %s213 = sand.u32 %s57, 1
        %s214 = smul.addr %s213, 128
        %s215 = scalar_lea.vmem [#allocation2], %s214
        // Predicated region
        $region29: #{tpu_custom_call.1} parent=27 // pred_check
          %p216 = pneg %p70
        $region30: #{tpu_custom_call.1} parent=27 // pred_check_branch
          %218 = sbr.rel (%p216) target = $region32
        $region31: #{tpu_custom_call.1} parent=27 // pred_region
          %220 = dma.done %s212, 2048
        $region32: #{tpu_custom_call.1} parent=27 // pred_fallthru
          _
        %s221 = sand.u32 %s91, 1
        %s222 = scalar_lea.sflag [#allocation6], %s221
        %s223 = sand.u32 %s91, 1
        %s224 = smul.addr %s223, 32
        %s225 = scalar_lea.vmem [#allocation5], %s224
        // Predicated region
        $region33: #{tpu_custom_call.1} parent=27 // pred_check
          %p226 = pneg %p104
        $region34: #{tpu_custom_call.1} parent=27 // pred_check_branch
          %228 = sbr.rel (%p226) target = $region36
        $region35: #{tpu_custom_call.1} parent=27 // pred_region
          %230 = dma.done %s222, 512
        $region36: #{tpu_custom_call.1} parent=27 // pred_fallthru
          _
        %s231 = sand.u32 %s57, 1
        %s232 = scalar_lea.sflag [#allocation3], %s231
        %s233 = sand.u32 %s57, 1
        %s234 = smul.addr %s233, 128
        %s235 = scalar_lea.vmem [#allocation2], %s234
        %p236 = pneg %p70
        %p237 = pneg %p67
        %s238 = sand.u32 %s91, 1
        %s239 = scalar_lea.sflag [#allocation6], %s238
        %s240 = sand.u32 %s91, 1
        %s241 = smul.addr %s240, 32
        %s242 = scalar_lea.vmem [#allocation5], %s241
        %p243 = pneg %p104
        %p244 = pneg %p101
        %p245 = pneg %p132
        %p246 = pneg %p129
        %s247 = sand.u32 %s119, 1
        %s248 = scalar_lea.sflag [#allocation4], %s247
        %s249 = sand.u32 %s119, 1
        %s250 = smul.addr %s249, 8
        %s251 = scalar_lea.vmem [#allocation7], %s250
        %s252 = sadd.s32 %s28, %s29
        %p253 = scmp.lt.s32.totalorder %s252, 0
        %s254 = scalar_select %p253, %s252, 0
        %s255 = smul.u32 4, %s254
        %s256 = sadd.s32 %s28, %s29
        %p257 = scmp.lt.s32.totalorder %s256, 0
        %s258 = scalar_select %p257, %s256, 0
        %p259 = scmp.eq.s32.totalorder %s29, 0
        // Predicated region
        $region37: #{tpu_custom_call.1} parent=27 // pred_check
          %p260 = pneg %p259
        $region38: #{tpu_custom_call.1} parent=27 // pred_check_branch
          %262 = sbr.rel (%p260) target = $region40
        $region39: #{tpu_custom_call.1} parent=27 // pred_region
          %263 = vst [vmem:[%s251] sm:$0xff] 0.0
        $region40: #{tpu_custom_call.1} parent=27 // pred_fallthru
          _
        %v264 = vld [vmem:[%s215] sm:$0xff]
        %v265 = vld [vmem:[%s215 + $0x8] sm:$0xff]
        %v266 = vld [vmem:[%s215 + $0x10] sm:$0xff]
        %v267 = vld [vmem:[%s215 + $0x18] sm:$0xff]
        %s268 = scalar_lea.vmem %s215, 32 [#allocation2]
        %v269 = vld [vmem:[%s268] sm:$0xff]
        %v270 = vld [vmem:[%s268 + $0x8] sm:$0xff]
        %v271 = vld [vmem:[%s268 + $0x10] sm:$0xff]
        %v272 = vld [vmem:[%s268 + $0x18] sm:$0xff]
        %v273 = vmax.f32 %v264, %v269
        %v274 = vmax.f32 %v265, %v270
        %v275 = vmax.f32 %v266, %v271
        %v276 = vmax.f32 %v267, %v272
        %s277 = scalar_lea.vmem %s215, 64 [#allocation2]
        %v278 = vld [vmem:[%s277] sm:$0xff]
        %v279 = vld [vmem:[%s277 + $0x8] sm:$0xff]
        %v280 = vld [vmem:[%s277 + $0x10] sm:$0xff]
        %v281 = vld [vmem:[%s277 + $0x18] sm:$0xff]
        %v282 = vmax.f32 %v273, %v278
        %v283 = vmax.f32 %v274, %v279
        %v284 = vmax.f32 %v275, %v280
        %v285 = vmax.f32 %v276, %v281
        %s286 = scalar_lea.vmem %s215, 96 [#allocation2]
        %v287 = vld [vmem:[%s286] sm:$0xff]
        %v288 = vld [vmem:[%s286 + $0x8] sm:$0xff]
        %v289 = vld [vmem:[%s286 + $0x10] sm:$0xff]
        %v290 = vld [vmem:[%s286 + $0x18] sm:$0xff]
        %v291 = vmax.f32 %v282, %v287
        %v292 = vmax.f32 %v283, %v288
        %v293 = vmax.f32 %v284, %v289
        %v294 = vmax.f32 %v285, %v290
        %v295 = vsub.f32 %v264, %v291
        %v296 = vsub.f32 %v265, %v292
        %v297 = vsub.f32 %v266, %v293
        %v298 = vsub.f32 %v267, %v294
        %v299 = vmul.f32 %v295, 1.442695
        %v300 = vpow.pop %v299
        %v301 = vmul.f32 %v296, 1.442695
        %v302 = vpow.pop %v301
        %v303 = vmul.f32 %v297, 1.442695
        %v304 = vpow.pop %v303
        %v305 = vmul.f32 %v298, 1.442695
        %v306 = vpow.pop %v305
        %v307 = vld [vmem:[%s225] sm:$0xff]
        %v308 = vunpack.c.0.s8 %v307
        %v309 = vunpack.c.1.s8 %v307
        %v310 = vunpack.c.2.s8 %v307
        %v311 = vunpack.c.3.s8 %v307
        %v312 = vcvt.s32.f32 %v308
        %v313 = vcvt.s32.f32 %v309
        %v314 = vcvt.s32.f32 %v310
        %v315 = vcvt.s32.f32 %v311
        %v316 = vmul.f32 %v312, %v295
        %v317 = vmul.f32 %v313, %v296
        %v318 = vmul.f32 %v314, %v297
        %v319 = vmul.f32 %v315, %v298
        %v320 = vsub.f32 %v269, %v291
        %v321 = vsub.f32 %v270, %v292
        %v322 = vsub.f32 %v271, %v293
        %v323 = vsub.f32 %v272, %v294
        %v324 = vmul.f32 %v320, 1.442695
        %v325 = vpow.pop %v324
        %v326 = vmul.f32 %v321, 1.442695
        %v327 = vpow.pop %v326
        %v328 = vmul.f32 %v322, 1.442695
        %v329 = vpow.pop %v328
        %v330 = vmul.f32 %v323, 1.442695
        %v331 = vpow.pop %v330
        %v332 = vadd.f32 %v300, %v325
        %v333 = vadd.f32 %v302, %v327
        %v334 = vadd.f32 %v304, %v329
        %v335 = vadd.f32 %v306, %v331
        %s336 = scalar_lea.vmem %s225, 8 [#allocation5]
        %v337 = vld [vmem:[%s336] sm:$0xff]
        %v338 = vunpack.c.0.s8 %v337
        %v339 = vunpack.c.1.s8 %v337
        %v340 = vunpack.c.2.s8 %v337
        %v341 = vunpack.c.3.s8 %v337
        %v342 = vcvt.s32.f32 %v338
        %v343 = vcvt.s32.f32 %v339
        %v344 = vcvt.s32.f32 %v340
        %v345 = vcvt.s32.f32 %v341
        %v346 = vmul.f32 %v342, %v320
        %v347 = vmul.f32 %v343, %v321
        %v348 = vmul.f32 %v344, %v322
        %v349 = vmul.f32 %v345, %v323
        %v350 = vadd.f32 %v346, 0.0
        %v351 = vadd.f32 %v347, 0.0
        %v352 = vadd.f32 %v348, 0.0
        %v353 = vadd.f32 %v349, 0.0
        %v354 = vadd.f32 %v342, 0.0
        %v355 = vadd.f32 %v343, 0.0
        %v356 = vadd.f32 %v344, 0.0
        %v357 = vadd.f32 %v345, 0.0
        %v358 = vsub.f32 %v278, %v291
        %v359 = vsub.f32 %v279, %v292
        %v360 = vsub.f32 %v280, %v293
        %v361 = vsub.f32 %v281, %v294
        %v362 = vmul.f32 %v358, 1.442695
        %v363 = vpow.pop %v362
        %v364 = vmul.f32 %v359, 1.442695
        %v365 = vpow.pop %v364
        %v366 = vmul.f32 %v360, 1.442695
        %v367 = vpow.pop %v366
        %v368 = vmul.f32 %v361, 1.442695
        %v369 = vpow.pop %v368
        %v370 = vadd.f32 %v332, %v363
        %v371 = vadd.f32 %v333, %v365
        %v372 = vadd.f32 %v334, %v367
        %v373 = vadd.f32 %v335, %v369
        %s374 = scalar_lea.vmem %s225, 16 [#allocation5]
        %v375 = vld [vmem:[%s374] sm:$0xff]
        %v376 = vunpack.c.0.s8 %v375
        %v377 = vunpack.c.1.s8 %v375
        %v378 = vunpack.c.2.s8 %v375
        %v379 = vunpack.c.3.s8 %v375
        %v380 = vcvt.s32.f32 %v376
        %v381 = vcvt.s32.f32 %v377
        %v382 = vcvt.s32.f32 %v378
        %v383 = vcvt.s32.f32 %v379
        %v384 = vmul.f32 %v380, %v358
        %v385 = vmul.f32 %v381, %v359
        %v386 = vmul.f32 %v382, %v360
        %v387 = vmul.f32 %v383, %v361
        %v388 = vadd.f32 %v350, %v384
        %v389 = vadd.f32 %v351, %v385
        %v390 = vadd.f32 %v352, %v386
        %v391 = vadd.f32 %v353, %v387
        %v392 = vadd.f32 %v354, %v380
        %v393 = vadd.f32 %v355, %v381
        %v394 = vadd.f32 %v356, %v382
        %v395 = vadd.f32 %v357, %v383
        %v396 = vsub.f32 %v287, %v291
        %v397 = vsub.f32 %v288, %v292
        %v398 = vsub.f32 %v289, %v293
        %v399 = vsub.f32 %v290, %v294
        %v400 = vmul.f32 %v396, 1.442695
        %v401 = vpow.pop %v400
        %v402 = vmul.f32 %v397, 1.442695
        %v403 = vpow.pop %v402
        %v404 = vmul.f32 %v398, 1.442695
        %v405 = vpow.pop %v404
        %v406 = vmul.f32 %v399, 1.442695
        %v407 = vpow.pop %v406
        %v408 = vadd.f32 %v370, %v401
        %v409 = vadd.f32 %v371, %v403
        %v410 = vadd.f32 %v372, %v405
        %v411 = vadd.f32 %v373, %v407
        %s412 = scalar_lea.vmem %s225, 24 [#allocation5]
        %v413 = vld [vmem:[%s412] sm:$0xff]
        %v414 = vunpack.c.0.s8 %v413
        %v415 = vunpack.c.1.s8 %v413
        %v416 = vunpack.c.2.s8 %v413
        %v417 = vunpack.c.3.s8 %v413
        %v418 = vcvt.s32.f32 %v414
        %v419 = vcvt.s32.f32 %v415
        %v420 = vcvt.s32.f32 %v416
        %v421 = vcvt.s32.f32 %v417
        %v422 = vmul.f32 %v418, %v396
        %v423 = vmul.f32 %v419, %v397
        %v424 = vmul.f32 %v420, %v398
        %v425 = vmul.f32 %v421, %v399
        %v426 = vadd.f32 %v388, %v422
        %v427 = vadd.f32 %v389, %v423
        %v428 = vadd.f32 %v390, %v424
        %v429 = vadd.f32 %v391, %v425
        %v430 = vadd.f32 %v392, %v418
        %v431 = vadd.f32 %v393, %v419
        %v432 = vadd.f32 %v394, %v420
        %v433 = vadd.f32 %v395, %v421
        %v434 = vlog2.pop %v408
        %v435 = vmul.f32 %v434, 0.6931472
        %v436 = vlog2.pop %v409
        %v437 = vmul.f32 %v436, 0.6931472
        %v438 = vlog2.pop %v410
        %v439 = vmul.f32 %v438, 0.6931472
        %v440 = vlog2.pop %v411
        %v441 = vmul.f32 %v440, 0.6931472
        %v442 = vmul.f32 %v312, %v435
        %v443 = vmul.f32 %v313, %v437
        %v444 = vmul.f32 %v314, %v439
        %v445 = vmul.f32 %v315, %v441
        %v446 = vsub.f32 %v316, %v442
        %v447 = vsub.f32 %v317, %v443
        %v448 = vsub.f32 %v318, %v444
        %v449 = vsub.f32 %v319, %v445
        %v450 = vmul.f32 %v430, %v435
        %v451 = vmul.f32 %v431, %v437
        %v452 = vmul.f32 %v432, %v439
        %v453 = vmul.f32 %v433, %v441
        %v454 = vsub.f32 %v426, %v450
        %v455 = vsub.f32 %v427, %v451
        %v456 = vsub.f32 %v428, %v452
        %v457 = vsub.f32 %v429, %v453
        %v458 = vmul.f32 %v446, -1.0
        %v459 = vmul.f32 %v447, -1.0
        %v460 = vmul.f32 %v448, -1.0
        %v461 = vmul.f32 %v449, -1.0
        %v462 = vmul.f32 %v454, -1.0
        %v463 = vmul.f32 %v455, -1.0
        %v464 = vmul.f32 %v456, -1.0
        %v465 = vmul.f32 %v457, -1.0
        %v466 = vadd.f32 %v458, %v462
        %v467 = vadd.f32 %v459, %v463
        %v468 = vadd.f32 %v460, %v464
        %v469 = vadd.f32 %v461, %v465
        %v470 = vld [vmem:[%s251] sm:$0xff]
        %v471 = vadd.f32 %v466, %v467
        %v472 = vadd.f32 %v471, %v468
        %v473 = vadd.f32 %v472, %v469
        %v474 = vadd.f32 %v470, %v473
        %475 = vst [vmem:[%s251] sm:$0xff] %v474
        %s476 = sand.u32 %s119, 1
        %s477 = scalar_lea.sflag [#allocation4], %s476
        %s478 = sand.u32 %s119, 1
        %s479 = smul.addr %s478, 8
        %s480 = scalar_lea.vmem [#allocation7], %s479
        // Predicated region
        $region41: #{tpu_custom_call.1} parent=27 // pred_check
          %p481 = pneg %p129
        $region42: #{tpu_custom_call.1} parent=27 // pred_check_branch
          %483 = sbr.rel (%p481) target = $region44
        $region43: #{tpu_custom_call.1} parent=27 // pred_region
          %485 = vsyncadd %s477, 0
          %s486 = sadd.s32 %s28, %s27
          %s487 = smul.addr %s486, 8
          %s488 = scalar_lea.hbm %s2, %s487
          %s490 = sshll.u32 %s480, 4
          %s491 = int_to_ptr.vmem [resolvable:$true] %s490
          %s492 = sshll.u32 %s488, 4
          %s493 = int_to_ptr.hbm [resolvable:$true] %s492
          %495 = dma.vmem_to_hbm [thread:$0]  %s491, 128, %s493, %s477
        $region44: #{tpu_custom_call.1} parent=27 // pred_fallthru
          _
      $region28: #{tpu_custom_call.1} parent=5 // pred_fallthru
        _
      %p496 = scmp.le.s32.totalorder 2, %s17
      // Predicated region
      $region45: #{tpu_custom_call.1} parent=5 // pred_check
        %p497 = pneg %p496
      $region46: #{tpu_custom_call.1} parent=5 // pred_check_branch
        %499 = sbr.rel (%p497) target = $region48
      $region47: #{tpu_custom_call.1} parent=5 // pred_region
        %s500 = ssub.s32 %s17, 2
        // Predicated region
        $region49: #{tpu_custom_call.1} parent=47 // pred_check
          %p501 = pneg %p135
        $region50: #{tpu_custom_call.1} parent=47 // pred_check_branch
          %503 = sbr.rel (%p501) target = $region52
        $region51: #{tpu_custom_call.1} parent=47 // pred_region
          %s504 = sand.u32 %s120, 1
          %s505 = scalar_lea.sflag [#allocation4], %s504
          %s506 = sand.u32 %s120, 1
          %s507 = smul.addr %s506, 8
          %s508 = scalar_lea.vmem [#allocation7], %s507
          %510 = dma.done %s505, 128
        $region52: #{tpu_custom_call.1} parent=47 // pred_fallthru
          _
      $region48: #{tpu_custom_call.1} parent=5 // pred_fallthru
        _
    $region6: #{tpu_custom_call.1} parent=1 // loop_footer
      %s21 = sadd.s32 1, %s17
    $region7: #{tpu_custom_call.1} parent=1 // loop_footer_branch
      %16 = sbr.rel target = $region3
    $region8: #{tpu_custom_call.1} parent=1 // loop_exit
      _
    %511 = vsyncpa [#allocation3], 1
    %s512 = scalar_lea.sflag [#allocation3], 1
    %513 = vsyncpa %s512, 1
    %514 = vsyncpa [#allocation6], 1
    %s515 = scalar_lea.sflag [#allocation6], 1
    %516 = vsyncpa %s515, 1
    %517 = vsyncpa [#allocation4], 1
    %s518 = scalar_lea.sflag [#allocation4], 1
    %519 = vsyncpa %s518, 1

</llo_original>
